<compile_context>
chip_gen: v6e
topology: v6e:2x2x1
jax: 0.10.0
libtpu: 0.0.40
codegen_flags: <defaults>
</compile_context>

<pallas_src>
import functools
import math

import numpy as np
import jax
import jax.numpy as jnp
from jax import lax
from jax.experimental import pallas as pl
from jax.experimental.pallas import tpu as pltpu

# ----------------------------- config (small synthetic) -----------------------------
HIDDEN = 128         # model_dim (multiple of 128 so every block is lane-dense)
EMB = 128            # embedding_dim (== model_dim, as in the real config)
NUM_HEAD = 2
HEAD_DIM = HIDDEN // NUM_HEAD
N_LAYER = 2
VOCAB = 40           # vocab_size
EOS = VOCAB - 1
PHONEME_VOCAB = 50
BERT_DIM = 1024
FF = HIDDEN * 4
LN_EPS = 1e-5
NEG_INF = -1e30
TOP_K = 3
VPAD = 128           # vocab padded to a full lane width for the predict kernel
PRED_TILE_M = 8      # row tile for the predict/loss kernel


# ----------------------------- kernel 1: bert_proj linear ---------------------------
def _bert_proj_kernel(x_ref, w_ref, b_ref, o_ref):
    # x_ref: (1, T, 1024) bf16 block; w_ref: (1024, EMB) bf16 resident; b_ref: (1, EMB) f32
    o_ref[0] = (jnp.dot(x_ref[0], w_ref[...],
                        preferred_element_type=jnp.float32) + b_ref[...])


def bert_proj(bert_tok, w, b):
    # bert_tok: [B, T, 1024] bf16, w: [1024, EMB] bf16, b: [1, EMB] f32 -> [B, T, EMB] f32
    B, T, K = bert_tok.shape
    return pl.pallas_call(
        _bert_proj_kernel,
        out_shape=jax.ShapeDtypeStruct((B, T, EMB), jnp.float32),
        grid=(B,),
        in_specs=[pl.BlockSpec((1, T, K), lambda i: (i, 0, 0)),
                  pl.BlockSpec((K, EMB), lambda i: (0, 0)),     # resident weight
                  pl.BlockSpec((1, EMB), lambda i: (0, 0))],
        out_specs=pl.BlockSpec((1, T, EMB), lambda i: (i, 0, 0)),
        compiler_params=pltpu.CompilerParams(dimension_semantics=("parallel",)),
    )(bert_tok, w, b)


# -------------------- kernel 2: layer-gridded post-norm transformer -----------------
def _encoder_layer_kernel(vlen_ref, x_ref,
                          wqkv_ref, bqkv_ref, wo_ref, bo_ref,
                          n1w_ref, n1b_ref, w1_ref, b1_ref,
                          w2_ref, b2_ref, n2w_ref, n2b_ref,
                          o_ref, h_sc, bias_sc, *, num_head, head_dim):
    b = pl.program_id(0)
    l = pl.program_id(1)
    L, D = h_sc.shape

    @pl.when(l == 0)
    def _init():
        # activation carry + additive causal/key-padding bias, built once per batch elem.
        h_sc[...] = x_ref[0].astype(jnp.float32)
        vlen = vlen_ref[b]
        row = lax.broadcasted_iota(jnp.int32, (L, L), 0)
        col = lax.broadcasted_iota(jnp.int32, (L, L), 1)
        masked = jnp.logical_or(col > row, col >= vlen)
        bias_sc[...] = jnp.where(masked, NEG_INF, 0.0)

    def ln(z, w, c):
        mu = jnp.mean(z, axis=-1, keepdims=True)
        var = jnp.mean((z - mu) ** 2, axis=-1, keepdims=True)
        return (z - mu) * lax.rsqrt(var + LN_EPS) * w + c

    h = h_sc[...]                                              # (L, D) f32 carry
    bias = bias_sc[...]                                        # (L, L) f32

    # qkv projection; the 1/sqrt(head_dim) scale is already folded into the q columns.
    qkv = jnp.dot(h.astype(jnp.bfloat16), wqkv_ref[0],
                  preferred_element_type=jnp.float32) + bqkv_ref[0]     # (L, 3D)

    wo = wo_ref[0]                                             # (D, D) bf16, loaded once
    attn = jnp.zeros((L, D), jnp.float32)
    # TODO(synk): at production NUM_HEAD (16) switch to a batched (H, L, hd) head layout;
    # at 2 heads the static loop + per-head W_o accumulation is the safer lowering.
    for hh in range(num_head):                                 # static head loop
        lo = hh * head_dim
        qh = qkv[:, lo:lo + head_dim].astype(jnp.bfloat16)
        kh = qkv[:, D + lo:D + lo + head_dim].astype(jnp.bfloat16)
        vh = qkv[:, 2 * D + lo:2 * D + lo + head_dim].astype(jnp.bfloat16)
        s = lax.dot_general(qh, kh, (((1,), (1,)), ((), ())),
                            preferred_element_type=jnp.float32) + bias
        s = s - jnp.max(s, axis=-1, keepdims=True)
        p = jnp.exp(s)
        p = p / jnp.sum(p, axis=-1, keepdims=True)             # exact softmax (training loss)
        ctx = jnp.dot(p.astype(jnp.bfloat16), vh,
                      preferred_element_type=jnp.float32)      # (L, hd)
        # accumulate through W_o's per-head row block on the MXU (no scratch column stores)
        attn = attn + jnp.dot(ctx.astype(jnp.bfloat16), wo[lo:lo + head_dim, :],
                              preferred_element_type=jnp.float32)
    attn = attn + bo_ref[0]

    x1 = ln(h + attn, n1w_ref[0], n1b_ref[0])
    hid = jnp.maximum(
        jnp.dot(x1.astype(jnp.bfloat16), w1_ref[0],
                preferred_element_type=jnp.float32) + b1_ref[0], 0.0)
    ff = jnp.dot(hid.astype(jnp.bfloat16), w2_ref[0],
                 preferred_element_type=jnp.float32) + b2_ref[0]
    h_new = ln(x1 + ff, n2w_ref[0], n2b_ref[0])
    h_sc[...] = h_new

    @pl.when(l == pl.num_programs(1) - 1)
    def _finish():
        # NOTE: fully masked (padded) query rows degrade to a uniform softmax; those rows
        # are sliced away downstream, matching the reference usage.
        o_ref[0] = h_new.astype(o_ref.dtype)


ENC_WEIGHT_NAMES = ('wqkv', 'bqkv', 'wo', 'bo', 'n1w', 'n1b',
                    'w1', 'b1', 'w2', 'b2', 'n2w', 'n2b')


def encoder_stack(x, valid_len, enc):
    # x: [B, L, D] f32, valid_len: [B] int32, enc: per-layer weights stacked on axis 0.
    B, L, D = x.shape
    weights = [enc[n] for n in ENC_WEIGHT_NAMES]

    def wspec(arr):
        # one layer's slice of the stacked weight, streamed per (batch, layer) step
        return pl.BlockSpec((1,) + arr.shape[1:], lambda b, l: (l, 0, 0))

    kern = functools.partial(_encoder_layer_kernel, num_head=NUM_HEAD, head_dim=HEAD_DIM)
    return pl.pallas_call(
        kern,
        out_shape=jax.ShapeDtypeStruct((B, L, D), jnp.float32),
        grid=(B, N_LAYER),
        in_specs=[pl.BlockSpec(memory_space=pltpu.MemorySpace.SMEM),        # valid lengths
                  pl.BlockSpec((1, L, D), lambda b, l: (b, 0, 0))]          # embeddings
                 + [wspec(w) for w in weights],
        out_specs=pl.BlockSpec((1, L, D), lambda b, l: (b, 0, 0)),
        scratch_shapes=[pltpu.VMEM((L, D), jnp.float32),    # activation carry across layers
                        pltpu.VMEM((L, L), jnp.float32)],   # cached attention bias
        compiler_params=pltpu.CompilerParams(
            dimension_semantics=("parallel", "arbitrary")),
    )(valid_len, x, *weights)


# -------------- kernel 3: predict layer + CE(sum) loss + top-k accuracy -------------
def _predict_loss_kernel(x_ref, w_ref, tgt_ref, out_ref, *, vocab, eos, top_k):
    @pl.when(pl.program_id(0) == 0)
    def _():
        out_ref[...] = jnp.zeros_like(out_ref)

    x = x_ref[...].astype(jnp.bfloat16)                        # (TM, D)
    logits = jnp.dot(x, w_ref[...],
                     preferred_element_type=jnp.float32)       # (TM, VPAD) lane-dense
    cls = lax.broadcasted_iota(jnp.int32, logits.shape, 1)
    real = cls < vocab
    logits = jnp.where(real, logits, NEG_INF)

    tgt = tgt_ref[...]                                         # (TM, 1) int32, -1 = pad row
    row_valid = tgt >= 0
    m = jnp.max(logits, axis=-1, keepdims=True)
    z = logits - m
    ez = jnp.where(real, jnp.exp(z), 0.0)
    lse = jnp.log(jnp.sum(ez, axis=-1, keepdims=True))

    onehot = cls == tgt
    tgt_z = jnp.sum(jnp.where(onehot, z, 0.0), axis=-1, keepdims=True)
    tgt_logit = jnp.sum(jnp.where(onehot, logits, 0.0), axis=-1, keepdims=True)
    nll = jnp.where(row_valid, lse - tgt_z, 0.0)               # (TM, 1)

    # NOTE: ties at the target logit always count as in-top-k (may differ from torch.topk).
    rank = jnp.sum((logits > tgt_logit).astype(jnp.float32), axis=-1, keepdims=True)
    in_topk = rank < float(top_k)
    valid = jnp.logical_and(row_valid, tgt != eos)

    loss_s = jnp.sum(nll, axis=0, keepdims=True)                                   # (1,1)
    corr_s = jnp.sum(jnp.where(jnp.logical_and(valid, in_topk), 1.0, 0.0),
                     axis=0, keepdims=True)
    val_s = jnp.sum(jnp.where(valid, 1.0, 0.0), axis=0, keepdims=True)

    lane = lax.broadcasted_iota(jnp.int32, out_ref.shape, 1)                       # (1,128)
    out_ref[...] = out_ref[...] + (jnp.where(lane == 0, loss_s, 0.0)
                                   + jnp.where(lane == 1, corr_s, 0.0)
                                   + jnp.where(lane == 2, val_s, 0.0))


def predict_and_loss(y_dec, w_pred, targets):
    # y_dec: [B, Ly, D], targets: [B, Ly] int, w_pred: [D, VPAD] bf16
    B, Ly, D = y_dec.shape
    M = B * Ly
    tm = PRED_TILE_M
    m_pad = ((M + tm - 1) // tm) * tm
    x_flat = y_dec.reshape(M, D)
    tgt_flat = targets.astype(jnp.int32).reshape(M, 1)
    if m_pad != M:
        x_flat = jnp.pad(x_flat, ((0, m_pad - M), (0, 0)))
        tgt_flat = jnp.pad(tgt_flat, ((0, m_pad - M), (0, 0)), constant_values=-1)

    kern = functools.partial(_predict_loss_kernel, vocab=VOCAB, eos=EOS, top_k=TOP_K)
    stats = pl.pallas_call(
        kern,
        out_shape=jax.ShapeDtypeStruct((1, 128), jnp.float32),
        grid=(m_pad // tm,),
        in_specs=[pl.BlockSpec((tm, D), lambda i: (i, 0)),
                  pl.BlockSpec((D, VPAD), lambda i: (0, 0)),       # resident weight
                  pl.BlockSpec((tm, 1), lambda i: (i, 0))],
        out_specs=pl.BlockSpec((1, 128), lambda i: (0, 0)),
        compiler_params=pltpu.CompilerParams(dimension_semantics=("arbitrary",)),
    )(x_flat, w_pred, tgt_flat)
    total_loss = stats[0, 0]
    acc = stats[0, 1] / jnp.maximum(stats[0, 2], 1.0)
    return total_loss, acc


# ----------------------------------- glue / params ----------------------------------
def sine_pe(length, d):
    pos = np.arange(length, dtype=np.float32)[:, None]
    div = np.exp(np.arange(0, d, 2, dtype=np.float32) * -(np.log(10000.0) / d))
    pe = np.zeros((length, d), np.float32)
    pe[:, 0::2] = np.sin(pos * div)
    pe[:, 1::2] = np.cos(pos * div)
    return jnp.asarray(pe)


def init_params(key):
    keys = jax.random.split(key, 64)
    ki = iter(keys)

    def nrm(shape, scale=0.02):
        return jax.random.normal(next(ki), shape, jnp.float32) * scale

    def stack(shape):
        return jnp.stack([nrm(shape) for _ in range(N_LAYER)], axis=0)

    wqkv = stack((HIDDEN, 3 * HIDDEN))
    bqkv = stack((1, 3 * HIDDEN))
    # Fold the 1/sqrt(head_dim) attention scale into the q columns at param-prep time:
    # (x @ Wq + bq) * s == x @ (Wq * s) + (bq * s).
    qscale = jnp.concatenate(
        [jnp.full((1, 1, HIDDEN), 1.0 / math.sqrt(HEAD_DIM), jnp.float32),
         jnp.ones((1, 1, 2 * HIDDEN), jnp.float32)], axis=-1)

    enc = {
        'wqkv': (wqkv * qscale).astype(jnp.bfloat16),          # (K, N) bf16 MXU layout
        'bqkv': bqkv * qscale,
        'wo':   stack((HIDDEN, HIDDEN)).astype(jnp.bfloat16),
        'bo':   stack((1, HIDDEN)),
        'n1w':  jnp.ones((N_LAYER, 1, HIDDEN), jnp.float32),
        'n1b':  jnp.zeros((N_LAYER, 1, HIDDEN), jnp.float32),
        'w1':   stack((HIDDEN, FF)).astype(jnp.bfloat16),
        'b1':   stack((1, FF)),
        'w2':   stack((FF, HIDDEN)).astype(jnp.bfloat16),
        'b2':   stack((1, HIDDEN)),
        'n2w':  jnp.ones((N_LAYER, 1, HIDDEN), jnp.float32),
        'n2b':  jnp.zeros((N_LAYER, 1, HIDDEN), jnp.float32),
    }

    pred_w = jnp.zeros((HIDDEN, VPAD), jnp.float32)
    pred_w = pred_w.at[:, :VOCAB].set(nrm((HIDDEN, VOCAB)))

    return {
        'text_emb': nrm((PHONEME_VOCAB, EMB)),
        'audio_emb': nrm((VOCAB, EMB)),
        'bert_w': nrm((BERT_DIM, EMB)).astype(jnp.bfloat16),   # (K, N) bf16 MXU layout
        'bert_b': nrm((1, EMB)),
        'alpha_text': jnp.float32(1.0),
        'alpha_audio': jnp.float32(1.0),
        'pred_w': pred_w.astype(jnp.bfloat16),                 # vocab padded to 128 lanes
        'enc': enc,
    }


def forward(params, x, x_lens, y, y_lens, bert_feature,
            phone_len, bert_feature_len, speaker_list, semantic_len):
    B = x.shape[0]
    max_speakers_len = max(len(s) for s in speaker_list)

    s_x_lens, s_y_lens = [], []
    sx_sum_lens, sy_sums, sxsy_sum_lens = [], [], []
    for index in range(B):
        sxl, syl, sx, sy = [], [], 0, 0
        for s in range(max_speakers_len):
            if s < len(phone_len[index]):
                sxl.append(phone_len[index][s])
                sx += phone_len[index][s]
            if s == len(phone_len[index]) - 1:
                syl.append(semantic_len[index][s])
                sy += semantic_len[index][s]
        s_x_lens.append(sxl); s_y_lens.append(syl)
        sx_sum_lens.append(sx); sy_sums.append(sy); sxsy_sum_lens.append(sx + sy)
    max_dialog_len = max(a + b for a, b in zip(sx_sum_lens, sy_sums))

    # bert projection: fused transpose + bf16 cast (single XLA pass), then a tiled
    # Pallas matmul with the weight resident across the batch grid.
    bert_tok = jnp.swapaxes(bert_feature, 1, 2).astype(jnp.bfloat16)   # [B, T_x, 1024] bf16
    bert_projed = bert_proj(bert_tok, params['bert_w'], params['bert_b'])  # [B, T_x, EMB]

    pe = sine_pe(max_dialog_len, EMB)

    # dialog splicing (host-side Python loop, lengths are static Python ints)
    embeds = []
    for index in range(B):
        start_x = 0
        start_y = sum(s_y_lens[index][:-1])
        pieces = []
        for s in range(max_speakers_len):
            if s < len(semantic_len[index]):
                plen = phone_len[index][s]
                x_id = x[index, start_x:start_x + plen]
                xb = bert_projed[index, start_x:start_x + plen]
                start_x += plen
                s_x_embed = jnp.take(params['text_emb'], x_id, axis=0) + xb
                s_x_embed = s_x_embed + params['alpha_text'] * pe[:plen]
                if s == len(semantic_len[index]) - 1:
                    slen = semantic_len[index][s]
                    y_id = y[index, start_y:start_y + slen]
                    cut = max_dialog_len - (sx_sum_lens[index] + sy_sums[index])
                    if cut > 0:
                        # TODO(synk): original pads with token id 1024 (its audio vocab);
                        # not triggered for the equal-length example inputs used here.
                        y_id = jnp.concatenate(
                            [y_id, jnp.full((cut,), VOCAB - 1, y_id.dtype)])
                    s_y_embed = jnp.take(params['audio_emb'], y_id, axis=0)
                    s_y_embed = s_y_embed + params['alpha_audio'] * pe[:y_id.shape[0]]
                    pieces.append(s_x_embed)
                    pieces.append(s_y_embed)
                else:
                    pieces.append(s_x_embed)
        embeds.append(jnp.concatenate(pieces, axis=0))
    s_x_s_y_embeds = jnp.stack(embeds, axis=0)                   # [B, L, EMB]

    # targets (pad_y_eos)
    max_y = y.shape[1]
    y_lens_arr = jnp.asarray(y_lens, jnp.int32)
    dialog_mask = jnp.arange(max_y)[None, :] >= y_lens_arr[:, None]
    dialog_mask_int = dialog_mask.astype(jnp.int32)
    dialog_codes = y.astype(jnp.int32) * (1 - dialog_mask_int)
    targets_full = (jnp.pad(dialog_codes, ((0, 0), (0, 1))) +
                    EOS * jnp.pad(dialog_mask_int, ((0, 0), (0, 1)),
                                  constant_values=1))
    dialog_targets = targets_full[:, 1:]

    # layer-gridded transformer encoder (mask built in-kernel from valid lengths)
    valid_len = jnp.asarray(sxsy_sum_lens, jnp.int32)
    xy_dec = encoder_stack(s_x_s_y_embeds, valid_len, params['enc'])

    # slice out decoded audio part + matching targets
    max_sy = int(max(y_lens))
    y_decs, tgt_decs = [], []
    for b in range(B):
        start_dec = sum(s_x_lens[b])
        end_dec = start_dec + s_y_lens[b][-1]
        start_tar = sum(s_y_lens[b][:-1])
        end_tar = start_tar + s_y_lens[b][-1]
        yd = xy_dec[b, start_dec:end_dec]
        td = dialog_targets[b, start_tar:end_tar]
        if max_sy > yd.shape[0]:
            # TODO(synk): original pads hidden states with constant 1024 / width 512 and
            # target id 1024; not triggered for the equal-length example inputs used here.
            pad_n = max_sy - yd.shape[0]
            yd = jnp.concatenate(
                [yd, jnp.full((pad_n, yd.shape[1]), 1024.0, yd.dtype)], axis=0)
            td = jnp.concatenate([td, jnp.full((pad_n,), 1024, td.dtype)])
        y_decs.append(yd)
        tgt_decs.append(td)
    y_dec = jnp.stack(y_decs, axis=0)            # [B, max_sy, D]
    target_dec = jnp.stack(tgt_decs, axis=0)     # [B, max_sy]

    loss, acc = predict_and_loss(y_dec, params['pred_w'], target_dec)
    return loss, acc


if __name__ == "__main__":
    key = jax.random.PRNGKey(0)
    kp, kx, ky, kb = jax.random.split(key, 4)
    params = init_params(kp)

    B = 2
    T = 8                                  # phones per dialog (L = 16, multiple of 8)
    phone_len = [[T], [T]]
    semantic_len = [[T], [T]]
    speaker_list = [["spk0"], ["spk0"]]
    x_lens = [T, T]
    y_lens = [T, T]
    bert_feature_len = [T, T]

    x = jax.random.randint(kx, (B, T), 0, PHONEME_VOCAB, dtype=jnp.int32)
    y = jax.random.randint(ky, (B, T), 0, VOCAB - 1, dtype=jnp.int32)
    bert_feature = jax.random.normal(kb, (B, BERT_DIM, T), jnp.float32)

    loss, acc = forward(params, x, x_lens, y, y_lens, bert_feature,
                        phone_len, bert_feature_len, speaker_list, semantic_len)
    jax.block_until_ready((loss, acc))
    assert np.isfinite(float(loss)) and 0.0 <= float(acc) <= 1.0
    print("KERNEL_OK")
</pallas_src>

<mosaic_0001>
module attributes {stable_mosaic.version = 11 : i64} {
  func.func @_bert_proj_kernel(%arg0: i32, %arg1: memref<1x8x1024xbf16, #tpu.memory_space<vmem>>, %arg2: memref<1024x128xbf16, #tpu.memory_space<vmem>>, %arg3: memref<1x128xf32, #tpu.memory_space<vmem>>, %arg4: memref<1x8x128xf32, #tpu.memory_space<vmem>>) attributes {dimension_semantics = [#tpu.dimension_semantics<parallel>], iteration_bounds = array<i64: 2>, scalar_prefetch = 0 : i64, scratch_operands = 0 : i64, tpu.core_type = #tpu.core_type<tc>, window_params = [{transform_indices = @transform_0, window_bounds = array<i64: 1, 8, 1024>}, {pipeline_mode = #tpu.pipeline_mode<synchronous>, transform_indices = @transform_1, window_bounds = array<i64: 1024, 128>}, {pipeline_mode = #tpu.pipeline_mode<synchronous>, transform_indices = @transform_2, window_bounds = array<i64: 1, 128>}, {transform_indices = @transform_3, window_bounds = array<i64: 1, 8, 128>}]} {
    %c0 = arith.constant 0 : index
    %c0_0 = arith.constant 0 : index
    %c0_1 = arith.constant 0 : index
    %0 = vector.load %arg1[%c0, %c0_0, %c0_1] : memref<1x8x1024xbf16, #tpu.memory_space<vmem>>, vector<1x8x1024xbf16>
    %1 = vector.shape_cast %0 : vector<1x8x1024xbf16> to vector<8x1024xbf16>
    %c0_2 = arith.constant 0 : index
    %c0_3 = arith.constant 0 : index
    %2 = vector.load %arg2[%c0_2, %c0_3] : memref<1024x128xbf16, #tpu.memory_space<vmem>>, vector<1024x128xbf16>
    %cst = arith.constant dense<0.000000e+00> : vector<8x128xf32>
    %3 = tpu.matmul %1, %2, %cst {dimension_numbers = #tpu.dot_dimension_numbers<[1], [0], [0], [1], [0, 0, 1, 1], [], []>} : vector<8x1024xbf16>, vector<1024x128xbf16>, vector<8x128xf32> -> vector<8x128xf32>
    %c0_4 = arith.constant 0 : index
    %c0_5 = arith.constant 0 : index
    %4 = vector.load %arg3[%c0_4, %c0_5] : memref<1x128xf32, #tpu.memory_space<vmem>>, vector<1x128xf32>
    %5 = vector.broadcast %4 : vector<1x128xf32> to vector<8x128xf32>
    %6 = arith.addf %3, %5 : vector<8x128xf32>
    %c0_6 = arith.constant 0 : index
    %c0_7 = arith.constant 0 : index
    %c0_8 = arith.constant 0 : index
    %7 = vector.load %arg4[%c0_6, %c0_7, %c0_8] : memref<1x8x128xf32, #tpu.memory_space<vmem>>, vector<1x8x128xf32>
    %8 = vector.shape_cast %7 : vector<1x8x128xf32> to vector<8x128xf32>
    %9 = vector.shape_cast %6 : vector<8x128xf32> to vector<1x8x128xf32>
    tpu.vector_store %arg4[%c0_6, %c0_7, %c0_8], %9 {strides = array<i32>} : memref<1x8x128xf32, #tpu.memory_space<vmem>>, vector<1x8x128xf32>,
    return
  }
  func.func @transform_0(%arg0: i32) -> (i32, i32, i32) {
    %c0_i32 = arith.constant 0 : i32
    %c0_i32_0 = arith.constant 0 : i32
    %c0_i32_1 = arith.constant 0 : i32
    return %arg0, %c0_i32, %c0_i32_0 : i32, i32, i32
  }
  func.func @transform_1(%arg0: i32) -> (i32, i32) {
    %c0_i32 = arith.constant 0 : i32
    %c0_i32_0 = arith.constant 0 : i32
    %c0_i32_1 = arith.constant 0 : i32
    return %c0_i32, %c0_i32_0 : i32, i32
  }
  func.func @transform_2(%arg0: i32) -> (i32, i32) {
    %c0_i32 = arith.constant 0 : i32
    %c0_i32_0 = arith.constant 0 : i32
    %c0_i32_1 = arith.constant 0 : i32
    return %c0_i32, %c0_i32_0 : i32, i32
  }
  func.func @transform_3(%arg0: i32) -> (i32, i32, i32) {
    %c0_i32 = arith.constant 0 : i32
    %c0_i32_0 = arith.constant 0 : i32
    %c0_i32_1 = arith.constant 0 : i32
    return %arg0, %c0_i32, %c0_i32_0 : i32, i32, i32
  }
}

</mosaic_0001>

<llo_original>
// kernel: tpu_custom_call.1
$region0: #{tpu_custom_call.1}
  #allocation0 [shape = 'u32[]', space=smem, size = 0x4, offset = 0x4, fixed_abs, tag = 'smem constant byte address 0x4 - core index']
  #allocation1 [shape = 'u32[144,128]{1,0:T(1,128)}', space=vmem, size = 0x12000, scoped, tag = 'internal scratch']
  %s0 = inlined_call_operand.hbm [shape: bf16[2,8,1024], index: 0, kind: input, shape index: {}]
  %s1 = inlined_call_operand.hbm [shape: bf16[1024,128], index: 1, kind: input, shape index: {}]
  %s2 = inlined_call_operand.vmem [shape: f32[1,128], index: 2, kind: input, shape index: {}]
  %s3 = inlined_call_operand.hbm [shape: f32[2,8,128], index: 3, kind: output, shape index: {}]
  %s4 = sld [smem:[#allocation0]]
  $region53: #{tpu_custom_call.1} parent=0
    _
  %s6 = ssub.s32 1, %s4
  %s7 = scalar_select 0, %s6, %s4
  $region1: #{tpu_custom_call.1} parent=0
    #allocation2 [shape = 'u8[32768]{0}', space=vmem, size = 0x8000, scoped, tag = 'input window, operand 0']
    #allocation3 [shape = 's32[2]{0}', space=sflag, size = 0x8, scoped, tag = 'scoped memory for tpu_custom_call.1']
    #allocation4 [shape = 's32[2]{0}', space=sflag, size = 0x8, scoped, tag = 'scoped memory for tpu_custom_call.1']
    #allocation5 [shape = 'u8[262144]{0}', space=vmem, size = 0x40000, scoped, tag = 'input window, operand 1, single buffered']
    #allocation6 [shape = 's32[1]{0}', space=sflag, size = 0x4, scoped, tag = 'scoped memory for tpu_custom_call.1']
    #allocation7 [shape = 'u8[8192]{0}', space=vmem, size = 0x2000, scoped, tag = 'output window, operand 0']
    %8 = vsyncpa [#allocation3], 0
    %s9 = scalar_lea.sflag [#allocation3], 1
    %10 = vsyncpa %s9, 0
    %11 = vsyncpa [#allocation6], 0
    %12 = vsyncpa [#allocation4], 0
    %s13 = scalar_lea.sflag [#allocation4], 1
    %14 = vsyncpa %s13, 0
    loop: start=0, step=1, limit=4
    $region2: #{tpu_custom_call.1} parent=1 // loop_pre_header
      _
    $region3: #{tpu_custom_call.1} parent=1 // loop_header
      %s16 = sphi 0, %s20
      %p17 = scmp.ge.s32.totalorder %s16, 4
      %s26 = sphi 0, %s28
      %s29 = sphi 0, %s26
      %s30 = sphi 0, %s29
      %s46 = sphi 0, %s30
      %s50 = sphi 0, %s50
      %s52 = sphi 0, %s50
      %s53 = sphi 0, %s52
      %s67 = sphi 0, %s53
      %s71 = sphi 0, %s71
      %s73 = sphi 0, %s71
      %s74 = sphi 0, %s73
      %s88 = sphi 0, %s74
      %s94 = sphi 0, %s96
      %s97 = sphi 0, %s94
      %s98 = sphi 0, %s97
      %s114 = sphi 0, %s98
    $region4: #{tpu_custom_call.1} parent=1 // loop_header_branch
      %19 = sbr.rel (%p17) target = $region8
    $region5: #{tpu_custom_call.1} parent=1 // loop_body
      %s21 = ssub.s32 %s16, 1
      %s22 = ssub.s32 %s16, 2
      %s23 = sadd.s32 %s16, 1
      %s24 = ssub.s32 %s16, %s23
      %p25 = scmp.eq.s32.totalorder %s24, 0
      %s27 = sadd.s32 %s26, 1
      %s28 = scalar_select %p25, %s26, %s27
      %p31 = pneg %p25
      %p32 = scmp.eq.s32.totalorder %s16, 1
      %p33 = por %p31, %p32
      %p34 = scmp.ne.s32.totalorder %s26, %s29
      %p35 = scmp.eq.s32.totalorder %s16, 0
      %p36 = por %p34, %p35
      %p37 = scmp.ne.s32.totalorder %s26, %s29
      %p38 = scmp.eq.s32.totalorder %s21, 1
      %p39 = por %p37, %p38
      %p40 = scmp.ne.s32.totalorder %s29, %s30
      %p41 = scmp.eq.s32.totalorder %s21, 0
      %p42 = por %p40, %p41
      %p43 = scmp.ne.s32.totalorder %s29, %s30
      %p44 = scmp.eq.s32.totalorder %s22, 1
      %p45 = por %p43, %p44
      %p47 = scmp.ne.s32.totalorder %s30, %s46
      %p48 = scmp.eq.s32.totalorder %s22, 0
      %p49 = por %p47, %p48
      %s51 = sadd.s32 %s50, 1
      %p54 = scmp.eq.s32.totalorder %s16, 1
      %p55 = scmp.ne.s32.totalorder %s50, %s52
      %p56 = scmp.eq.s32.totalorder %s16, 0
      %p57 = por %p55, %p56
      %p58 = scmp.ne.s32.totalorder %s50, %s52
      %p59 = scmp.eq.s32.totalorder %s21, 1
      %p60 = por %p58, %p59
      %p61 = scmp.ne.s32.totalorder %s52, %s53
      %p62 = scmp.eq.s32.totalorder %s21, 0
      %p63 = por %p61, %p62
      %p64 = scmp.ne.s32.totalorder %s52, %s53
      %p65 = scmp.eq.s32.totalorder %s22, 1
      %p66 = por %p64, %p65
      %p68 = scmp.ne.s32.totalorder %s53, %s67
      %p69 = scmp.eq.s32.totalorder %s22, 0
      %p70 = por %p68, %p69
      %s72 = sadd.s32 %s71, 1
      %p75 = scmp.eq.s32.totalorder %s16, 1
      %p76 = scmp.ne.s32.totalorder %s71, %s73
      %p77 = scmp.eq.s32.totalorder %s16, 0
      %p78 = por %p76, %p77
      %p79 = scmp.ne.s32.totalorder %s71, %s73
      %p80 = scmp.eq.s32.totalorder %s21, 1
      %p81 = por %p79, %p80
      %p82 = scmp.ne.s32.totalorder %s73, %s74
      %p83 = scmp.eq.s32.totalorder %s21, 0
      %p84 = por %p82, %p83
      %p85 = scmp.ne.s32.totalorder %s73, %s74
      %p86 = scmp.eq.s32.totalorder %s22, 1
      %p87 = por %p85, %p86
      %p89 = scmp.ne.s32.totalorder %s74, %s88
      %p90 = scmp.eq.s32.totalorder %s22, 0
      %p91 = por %p89, %p90
      %s92 = ssub.s32 %s16, %s23
      %p93 = scmp.eq.s32.totalorder %s92, 0
      %s95 = sadd.s32 %s94, 1
      %s96 = scalar_select %p93, %s94, %s95
      %p99 = pneg %p93
      %p100 = scmp.eq.s32.totalorder %s16, 1
      %p101 = por %p99, %p100
      %p102 = scmp.ne.s32.totalorder %s94, %s97
      %p103 = scmp.eq.s32.totalorder %s16, 0
      %p104 = por %p102, %p103
      %p105 = scmp.ne.s32.totalorder %s94, %s97
      %p106 = scmp.eq.s32.totalorder %s21, 1
      %p107 = por %p105, %p106
      %p108 = scmp.ne.s32.totalorder %s97, %s98
      %p109 = scmp.eq.s32.totalorder %s21, 0
      %p110 = por %p108, %p109
      %p111 = scmp.ne.s32.totalorder %s97, %s98
      %p112 = scmp.eq.s32.totalorder %s22, 1
      %p113 = por %p111, %p112
      %p115 = scmp.ne.s32.totalorder %s98, %s114
      %p116 = scmp.eq.s32.totalorder %s22, 0
      %p117 = por %p115, %p116
      %p118 = scmp.le.s32.totalorder 1, %s16
      %p119 = scmp.lt.s32.totalorder %s16, 3
      %p120 = pnand %p118, %p119
      %p121 = pneg %p120
      // Predicated region
      $region9: #{tpu_custom_call.1} parent=5 // pred_check
        _
      $region10: #{tpu_custom_call.1} parent=5 // pred_check_branch
        %123 = sbr.rel (%p120) target = $region12
      $region11: #{tpu_custom_call.1} parent=5 // pred_region
        %s124 = ssub.s32 %s16, 1
        // Predicated region
        $region13: #{tpu_custom_call.1} parent=11 // pred_check
          %p125 = pneg %p63
        $region14: #{tpu_custom_call.1} parent=11 // pred_check_branch
          %127 = sbr.rel (%p125) target = $region16
        $region15: #{tpu_custom_call.1} parent=11 // pred_region
          %s129 = ssub.s32 8192, 8192
          %130 = vsyncadd [#allocation6], %s129
          %s131 = sshll.u32 [#allocation5], 4
          %s132 = int_to_ptr.vmem [resolvable:$true] %s131
          %137 = dma.hbm_to_vmem [thread:$0]  %s1, 8192, %s132, [#allocation6], 64, 64, 4
        $region16: #{tpu_custom_call.1} parent=11 // pred_fallthru
          _
        // Predicated region
        $region17: #{tpu_custom_call.1} parent=11 // pred_check
          %p138 = pneg %p84
        $region18: #{tpu_custom_call.1} parent=11 // pred_check_branch
          %140 = sbr.rel (%p138) target = $region20
        $region19: #{tpu_custom_call.1} parent=11 // pred_region
          _
        $region20: #{tpu_custom_call.1} parent=11 // pred_fallthru
          _
      $region12: #{tpu_custom_call.1} parent=5 // pred_fallthru
        _
      %p141 = scmp.lt.s32.totalorder %s16, 2
      // Predicated region
      $region21: #{tpu_custom_call.1} parent=5 // pred_check
        %p142 = pneg %p141
      $region22: #{tpu_custom_call.1} parent=5 // pred_check_branch
        %144 = sbr.rel (%p142) target = $region24
      $region23: #{tpu_custom_call.1} parent=5 // pred_region
        // Predicated region
        $region25: #{tpu_custom_call.1} parent=23 // pred_check
          %p145 = pneg %p36
        $region26: #{tpu_custom_call.1} parent=23 // pred_check_branch
          %147 = sbr.rel (%p145) target = $region28
        $region27: #{tpu_custom_call.1} parent=23 // pred_region
          %s148 = sand.u32 %s26, 1
          %s149 = scalar_lea.sflag [#allocation3], %s148
          %s150 = sand.u32 %s26, 1
          %s151 = smul.addr %s150, 32
          %s152 = scalar_lea.vmem [#allocation2], %s151
          %s154 = ssub.s32 512, 512
          %155 = vsyncadd %s149, %s154
          %s156 = smul.addr %s16, 8
          %s157 = smul.addr %s156, 64
          %s158 = scalar_lea.hbm %s0, %s157
          %s160 = sshll.u32 %s152, 4
          %s161 = int_to_ptr.vmem [resolvable:$true] %s160
          %163 = dma.hbm_to_vmem [thread:$0]  %s158, 512, %s161, %s149
        $region28: #{tpu_custom_call.1} parent=23 // pred_fallthru
          _
      $region24: #{tpu_custom_call.1} parent=5 // pred_fallthru
        _
      %p164 = scmp.le.s32.totalorder 1, %s16
      %p165 = scmp.lt.s32.totalorder %s16, 3
      %p166 = pnand %p164, %p165
      %p167 = pneg %p166
      // Predicated region
      $region29: #{tpu_custom_call.1} parent=5 // pred_check
        _
      $region30: #{tpu_custom_call.1} parent=5 // pred_check_branch
        %169 = sbr.rel (%p166) target = $region32
      $region31: #{tpu_custom_call.1} parent=5 // pred_region
        %s170 = ssub.s32 %s16, 1
        %s171 = sand.u32 %s29, 1
        %s172 = scalar_lea.sflag [#allocation3], %s171
        %s173 = sand.u32 %s29, 1
        %s174 = smul.addr %s173, 32
        %s175 = scalar_lea.vmem [#allocation2], %s174
        // Predicated region
        $region33: #{tpu_custom_call.1} parent=31 // pred_check
          %p176 = pneg %p42
        $region34: #{tpu_custom_call.1} parent=31 // pred_check_branch
          %178 = sbr.rel (%p176) target = $region36
        $region35: #{tpu_custom_call.1} parent=31 // pred_region
          %179 = dma.done %s172, 512
        $region36: #{tpu_custom_call.1} parent=31 // pred_fallthru
          _
        // Predicated region
        $region37: #{tpu_custom_call.1} parent=31 // pred_check
          %p180 = pneg %p63
        $region38: #{tpu_custom_call.1} parent=31 // pred_check_branch
          %182 = sbr.rel (%p180) target = $region40
        $region39: #{tpu_custom_call.1} parent=31 // pred_region
          %183 = dma.done [#allocation6], 8192
        $region40: #{tpu_custom_call.1} parent=31 // pred_fallthru
          _
        %s184 = sand.u32 %s29, 1
        %s185 = scalar_lea.sflag [#allocation3], %s184
        %s186 = sand.u32 %s29, 1
        %s187 = smul.addr %s186, 32
        %s188 = scalar_lea.vmem [#allocation2], %s187
        %p189 = pneg %p42
        %p190 = pneg %p39
        %p191 = pneg %p63
        %p192 = pneg %p60
        %p193 = pneg %p84
        %p194 = pneg %p81
        %p195 = pneg %p110
        %p196 = pneg %p107
        %s197 = sand.u32 %s97, 1
        %s198 = scalar_lea.sflag [#allocation4], %s197
        %s199 = sand.u32 %s97, 1
        %s200 = smul.addr %s199, 8
        %s201 = scalar_lea.vmem [#allocation7], %s200
        %v203 = vld [vmem:[%s175] sm:$0xff]
        %v204 = vld [vmem:[%s175 + $0x8] sm:$0xff]
        %v205 = vld [vmem:[%s175 + $0x10] sm:$0xff]
        %v206 = vld [vmem:[%s175 + $0x18] sm:$0xff]
        %v207 = vld [vmem:[#allocation5] sm:$0xf]
        %v208 = vld [vmem:[#allocation5 + $0x4] sm:$0xf]
        %v209 = vld [vmem:[#allocation5 + $0x8] sm:$0xf]
        %v210 = vld [vmem:[#allocation5 + $0xc] sm:$0xf]
        %v211 = vld [vmem:[#allocation5 + $0x10] sm:$0xf]
        %v212 = vld [vmem:[#allocation5 + $0x14] sm:$0xf]
        %v213 = vld [vmem:[#allocation5 + $0x18] sm:$0xf]
        %v214 = vld [vmem:[#allocation5 + $0x1c] sm:$0xf]
        %v215 = vld [vmem:[#allocation5 + $0x20] sm:$0xf]
        %v216 = vld [vmem:[#allocation5 + $0x24] sm:$0xf]
        %v217 = vld [vmem:[#allocation5 + $0x28] sm:$0xf]
        %v218 = vld [vmem:[#allocation5 + $0x2c] sm:$0xf]
        %v219 = vld [vmem:[#allocation5 + $0x30] sm:$0xf]
        %v220 = vld [vmem:[#allocation5 + $0x34] sm:$0xf]
        %v221 = vld [vmem:[#allocation5 + $0x38] sm:$0xf]
        %v222 = vld [vmem:[#allocation5 + $0x3c] sm:$0xf]
        %v223 = vld [vmem:[#allocation5 + $0x40] sm:$0xf]
        %v224 = vld [vmem:[#allocation5 + $0x44] sm:$0xf]
        %v225 = vld [vmem:[#allocation5 + $0x48] sm:$0xf]
        %v226 = vld [vmem:[#allocation5 + $0x4c] sm:$0xf]
        %v227 = vld [vmem:[#allocation5 + $0x50] sm:$0xf]
        %v228 = vld [vmem:[#allocation5 + $0x54] sm:$0xf]
        %v229 = vld [vmem:[#allocation5 + $0x58] sm:$0xf]
        %v230 = vld [vmem:[#allocation5 + $0x5c] sm:$0xf]
        %v231 = vld [vmem:[#allocation5 + $0x60] sm:$0xf]
        %v232 = vld [vmem:[#allocation5 + $0x64] sm:$0xf]
        %v233 = vld [vmem:[#allocation5 + $0x68] sm:$0xf]
        %v234 = vld [vmem:[#allocation5 + $0x6c] sm:$0xf]
        %v235 = vld [vmem:[#allocation5 + $0x70] sm:$0xf]
        %v236 = vld [vmem:[#allocation5 + $0x74] sm:$0xf]
        %v237 = vld [vmem:[#allocation5 + $0x78] sm:$0xf]
        %v238 = vld [vmem:[#allocation5 + $0x7c] sm:$0xf]
        %v239 = vld [vmem:[#allocation5 + $0x80] sm:$0xf]
        %v240 = vld [vmem:[#allocation5 + $0x84] sm:$0xf]
        %v241 = vld [vmem:[#allocation5 + $0x88] sm:$0xf]
        %v242 = vld [vmem:[#allocation5 + $0x8c] sm:$0xf]
        %v243 = vld [vmem:[#allocation5 + $0x90] sm:$0xf]
        %v244 = vld [vmem:[#allocation5 + $0x94] sm:$0xf]
        %v245 = vld [vmem:[#allocation5 + $0x98] sm:$0xf]
        %v246 = vld [vmem:[#allocation5 + $0x9c] sm:$0xf]
        %v247 = vld [vmem:[#allocation5 + $0xa0] sm:$0xf]
        %v248 = vld [vmem:[#allocation5 + $0xa4] sm:$0xf]
        %v249 = vld [vmem:[#allocation5 + $0xa8] sm:$0xf]
        %v250 = vld [vmem:[#allocation5 + $0xac] sm:$0xf]
        %v251 = vld [vmem:[#allocation5 + $0xb0] sm:$0xf]
        %v252 = vld [vmem:[#allocation5 + $0xb4] sm:$0xf]
        %v253 = vld [vmem:[#allocation5 + $0xb8] sm:$0xf]
        %v254 = vld [vmem:[#allocation5 + $0xbc] sm:$0xf]
        %v255 = vld [vmem:[#allocation5 + $0xc0] sm:$0xf]
        %v256 = vld [vmem:[#allocation5 + $0xc4] sm:$0xf]
        %v257 = vld [vmem:[#allocation5 + $0xc8] sm:$0xf]
        %v258 = vld [vmem:[#allocation5 + $0xcc] sm:$0xf]
        %v259 = vld [vmem:[#allocation5 + $0xd0] sm:$0xf]
        %v260 = vld [vmem:[#allocation5 + $0xd4] sm:$0xf]
        %v261 = vld [vmem:[#allocation5 + $0xd8] sm:$0xf]
        %v262 = vld [vmem:[#allocation5 + $0xdc] sm:$0xf]
        %v263 = vld [vmem:[#allocation5 + $0xe0] sm:$0xf]
        %v264 = vld [vmem:[#allocation5 + $0xe4] sm:$0xf]
        %v265 = vld [vmem:[#allocation5 + $0xe8] sm:$0xf]
        %v266 = vld [vmem:[#allocation5 + $0xec] sm:$0xf]
        %v267 = vld [vmem:[#allocation5 + $0xf0] sm:$0xf]
        %v268 = vld [vmem:[#allocation5 + $0xf4] sm:$0xf]
        %v269 = vld [vmem:[#allocation5 + $0xf8] sm:$0xf]
        %v270 = vld [vmem:[#allocation5 + $0xfc] sm:$0xf]
        %v271 = vld [vmem:[#allocation5 + $0x100] sm:$0xf]
        %v272 = vld [vmem:[#allocation5 + $0x104] sm:$0xf]
        %v273 = vld [vmem:[#allocation5 + $0x108] sm:$0xf]
        %v274 = vld [vmem:[#allocation5 + $0x10c] sm:$0xf]
        %v275 = vld [vmem:[#allocation5 + $0x110] sm:$0xf]
        %v276 = vld [vmem:[#allocation5 + $0x114] sm:$0xf]
        %v277 = vld [vmem:[#allocation5 + $0x118] sm:$0xf]
        %v278 = vld [vmem:[#allocation5 + $0x11c] sm:$0xf]
        %v279 = vld [vmem:[#allocation5 + $0x120] sm:$0xf]
        %v280 = vld [vmem:[#allocation5 + $0x124] sm:$0xf]
        %v281 = vld [vmem:[#allocation5 + $0x128] sm:$0xf]
        %v282 = vld [vmem:[#allocation5 + $0x12c] sm:$0xf]
        %v283 = vld [vmem:[#allocation5 + $0x130] sm:$0xf]
        %v284 = vld [vmem:[#allocation5 + $0x134] sm:$0xf]
        %v285 = vld [vmem:[#allocation5 + $0x138] sm:$0xf]
        %v286 = vld [vmem:[#allocation5 + $0x13c] sm:$0xf]
        %v287 = vld [vmem:[#allocation5 + $0x140] sm:$0xf]
        %v288 = vld [vmem:[#allocation5 + $0x144] sm:$0xf]
        %v289 = vld [vmem:[#allocation5 + $0x148] sm:$0xf]
        %v290 = vld [vmem:[#allocation5 + $0x14c] sm:$0xf]
        %v291 = vld [vmem:[#allocation5 + $0x150] sm:$0xf]
        %v292 = vld [vmem:[#allocation5 + $0x154] sm:$0xf]
        %v293 = vld [vmem:[#allocation5 + $0x158] sm:$0xf]
        %v294 = vld [vmem:[#allocation5 + $0x15c] sm:$0xf]
        %v295 = vld [vmem:[#allocation5 + $0x160] sm:$0xf]
        %v296 = vld [vmem:[#allocation5 + $0x164] sm:$0xf]
        %v297 = vld [vmem:[#allocation5 + $0x168] sm:$0xf]
        %v298 = vld [vmem:[#allocation5 + $0x16c] sm:$0xf]
        %v299 = vld [vmem:[#allocation5 + $0x170] sm:$0xf]
        %v300 = vld [vmem:[#allocation5 + $0x174] sm:$0xf]
        %v301 = vld [vmem:[#allocation5 + $0x178] sm:$0xf]
        %v302 = vld [vmem:[#allocation5 + $0x17c] sm:$0xf]
        %v303 = vld [vmem:[#allocation5 + $0x180] sm:$0xf]
        %v304 = vld [vmem:[#allocation5 + $0x184] sm:$0xf]
        %v305 = vld [vmem:[#allocation5 + $0x188] sm:$0xf]
        %v306 = vld [vmem:[#allocation5 + $0x18c] sm:$0xf]
        %v307 = vld [vmem:[#allocation5 + $0x190] sm:$0xf]
        %v308 = vld [vmem:[#allocation5 + $0x194] sm:$0xf]
        %v309 = vld [vmem:[#allocation5 + $0x198] sm:$0xf]
        %v310 = vld [vmem:[#allocation5 + $0x19c] sm:$0xf]
        %v311 = vld [vmem:[#allocation5 + $0x1a0] sm:$0xf]
        %v312 = vld [vmem:[#allocation5 + $0x1a4] sm:$0xf]
        %v313 = vld [vmem:[#allocation5 + $0x1a8] sm:$0xf]
        %v314 = vld [vmem:[#allocation5 + $0x1ac] sm:$0xf]
        %v315 = vld [vmem:[#allocation5 + $0x1b0] sm:$0xf]
        %v316 = vld [vmem:[#allocation5 + $0x1b4] sm:$0xf]
        %v317 = vld [vmem:[#allocation5 + $0x1b8] sm:$0xf]
        %v318 = vld [vmem:[#allocation5 + $0x1bc] sm:$0xf]
        %v319 = vld [vmem:[#allocation5 + $0x1c0] sm:$0xf]
        %v320 = vld [vmem:[#allocation5 + $0x1c4] sm:$0xf]
        %v321 = vld [vmem:[#allocation5 + $0x1c8] sm:$0xf]
        %v322 = vld [vmem:[#allocation5 + $0x1cc] sm:$0xf]
        %v323 = vld [vmem:[#allocation5 + $0x1d0] sm:$0xf]
        %v324 = vld [vmem:[#allocation5 + $0x1d4] sm:$0xf]
        %v325 = vld [vmem:[#allocation5 + $0x1d8] sm:$0xf]
        %v326 = vld [vmem:[#allocation5 + $0x1dc] sm:$0xf]
        %v327 = vld [vmem:[#allocation5 + $0x1e0] sm:$0xf]
        %v328 = vld [vmem:[#allocation5 + $0x1e4] sm:$0xf]
        %v329 = vld [vmem:[#allocation5 + $0x1e8] sm:$0xf]
        %v330 = vld [vmem:[#allocation5 + $0x1ec] sm:$0xf]
        %v331 = vld [vmem:[#allocation5 + $0x1f0] sm:$0xf]
        %v332 = vld [vmem:[#allocation5 + $0x1f4] sm:$0xf]
        %v333 = vld [vmem:[#allocation5 + $0x1f8] sm:$0xf]
        %v334 = vld [vmem:[#allocation5 + $0x1fc] sm:$0xf]
        %v335 = vld [vmem:[%s2] sm:$0x1]
        %v337 = vlaneseq
        %v338 = vshrl.u32 %v337, 7
        %v339 = vsub.s32 0, %v338
        %v340 = vrot.slane %v335, %v339
        %v346 = vunpack.c.l.b16 %v203
        %v347 = vunpack.c.h.b16 %v203
        %v348 = vunpack.c.l.b16 %v204
        %v349 = vunpack.c.h.b16 %v204
        %v350 = vunpack.c.l.b16 %v205
        %v351 = vunpack.c.h.b16 %v205
        %v352 = vunpack.c.l.b16 %v206
        %v353 = vunpack.c.h.b16 %v206
        %v354 = vpack.c.b16 %v346, %v346
        %v355 = vpack.c.b16 %v347, %v347
        %v356 = vpack.c.b16 %v348, %v348
        %v357 = vpack.c.b16 %v349, %v349
        %v358 = vpack.c.b16 %v350, %v350
        %v359 = vpack.c.b16 %v351, %v351
        %v360 = vpack.c.b16 %v352, %v352
        %v361 = vpack.c.b16 %v353, %v353
        %v498 = vunpack.c.l.b16 %v207
        %v499 = vunpack.c.l.b16 %v208
        %v500 = vunpack.c.l.b16 %v209
        %v501 = vunpack.c.l.b16 %v210
        %v502 = vunpack.c.l.b16 %v211
        %v503 = vunpack.c.l.b16 %v212
        %v504 = vunpack.c.l.b16 %v213
        %v505 = vunpack.c.l.b16 %v214
        %v506 = vunpack.c.l.b16 %v215
        %v507 = vunpack.c.l.b16 %v216
        %v508 = vunpack.c.l.b16 %v217
        %v509 = vunpack.c.l.b16 %v218
        %v510 = vunpack.c.l.b16 %v219
        %v511 = vunpack.c.l.b16 %v220
        %v512 = vunpack.c.l.b16 %v221
        %v513 = vunpack.c.l.b16 %v222
        %v514 = vunpack.c.l.b16 %v223
        %v515 = vunpack.c.l.b16 %v224
        %v516 = vunpack.c.l.b16 %v225
        %v517 = vunpack.c.l.b16 %v226
        %v518 = vunpack.c.l.b16 %v227
        %v519 = vunpack.c.l.b16 %v228
        %v520 = vunpack.c.l.b16 %v229
        %v521 = vunpack.c.l.b16 %v230
        %v522 = vunpack.c.l.b16 %v231
        %v523 = vunpack.c.l.b16 %v232
        %v524 = vunpack.c.l.b16 %v233
        %v525 = vunpack.c.l.b16 %v234
        %v526 = vunpack.c.l.b16 %v235
        %v527 = vunpack.c.l.b16 %v236
        %v528 = vunpack.c.l.b16 %v237
        %v529 = vunpack.c.l.b16 %v238
        %v530 = vunpack.c.l.b16 %v239
        %v531 = vunpack.c.l.b16 %v240
        %v532 = vunpack.c.l.b16 %v241
        %v533 = vunpack.c.l.b16 %v242
        %v534 = vunpack.c.l.b16 %v243
        %v535 = vunpack.c.l.b16 %v244
        %v536 = vunpack.c.l.b16 %v245
        %v537 = vunpack.c.l.b16 %v246
        %v538 = vunpack.c.l.b16 %v247
        %v539 = vunpack.c.l.b16 %v248
        %v540 = vunpack.c.l.b16 %v249
        %v541 = vunpack.c.l.b16 %v250
        %v542 = vunpack.c.l.b16 %v251
        %v543 = vunpack.c.l.b16 %v252
        %v544 = vunpack.c.l.b16 %v253
        %v545 = vunpack.c.l.b16 %v254
        %v546 = vunpack.c.l.b16 %v255
        %v547 = vunpack.c.l.b16 %v256
        %v548 = vunpack.c.l.b16 %v257
        %v549 = vunpack.c.l.b16 %v258
        %v550 = vunpack.c.l.b16 %v259
        %v551 = vunpack.c.l.b16 %v260
        %v552 = vunpack.c.l.b16 %v261
        %v553 = vunpack.c.l.b16 %v262
        %v554 = vunpack.c.l.b16 %v263
        %v555 = vunpack.c.l.b16 %v264
        %v556 = vunpack.c.l.b16 %v265
        %v557 = vunpack.c.l.b16 %v266
        %v558 = vunpack.c.l.b16 %v267
        %v559 = vunpack.c.l.b16 %v268
        %v560 = vunpack.c.l.b16 %v269
        %v561 = vunpack.c.l.b16 %v270
        %v562 = vunpack.c.l.b16 %v271
        %v563 = vunpack.c.l.b16 %v272
        %v564 = vunpack.c.l.b16 %v273
        %v565 = vunpack.c.l.b16 %v274
        %v566 = vunpack.c.l.b16 %v275
        %v567 = vunpack.c.l.b16 %v276
        %v568 = vunpack.c.l.b16 %v277
        %v569 = vunpack.c.l.b16 %v278
        %v570 = vunpack.c.l.b16 %v279
        %v571 = vunpack.c.l.b16 %v280
        %v572 = vunpack.c.l.b16 %v281
        %v573 = vunpack.c.l.b16 %v282
        %v574 = vunpack.c.l.b16 %v283
        %v575 = vunpack.c.l.b16 %v284
        %v576 = vunpack.c.l.b16 %v285
        %v577 = vunpack.c.l.b16 %v286
        %v578 = vunpack.c.l.b16 %v287
        %v579 = vunpack.c.l.b16 %v288
        %v580 = vunpack.c.l.b16 %v289
        %v581 = vunpack.c.l.b16 %v290
        %v582 = vunpack.c.l.b16 %v291
        %v583 = vunpack.c.l.b16 %v292
        %v584 = vunpack.c.l.b16 %v293
        %v585 = vunpack.c.l.b16 %v294
        %v586 = vunpack.c.l.b16 %v295
        %v587 = vunpack.c.l.b16 %v296
        %v588 = vunpack.c.l.b16 %v297
        %v589 = vunpack.c.l.b16 %v298
        %v590 = vunpack.c.l.b16 %v299
        %v591 = vunpack.c.l.b16 %v300
        %v592 = vunpack.c.l.b16 %v301
        %v593 = vunpack.c.l.b16 %v302
        %v594 = vunpack.c.l.b16 %v303
        %v595 = vunpack.c.l.b16 %v304
        %v596 = vunpack.c.l.b16 %v305
        %v597 = vunpack.c.l.b16 %v306
        %v598 = vunpack.c.l.b16 %v307
        %v599 = vunpack.c.l.b16 %v308
        %v600 = vunpack.c.l.b16 %v309
        %v601 = vunpack.c.l.b16 %v310
        %v602 = vunpack.c.l.b16 %v311
        %v603 = vunpack.c.l.b16 %v312
        %v604 = vunpack.c.l.b16 %v313
        %v605 = vunpack.c.l.b16 %v314
        %v606 = vunpack.c.l.b16 %v315
        %v607 = vunpack.c.l.b16 %v316
        %v608 = vunpack.c.l.b16 %v317
        %v609 = vunpack.c.l.b16 %v318
        %v610 = vunpack.c.l.b16 %v319
        %v611 = vunpack.c.l.b16 %v320
        %v612 = vunpack.c.l.b16 %v321
        %v613 = vunpack.c.l.b16 %v322
        %v614 = vunpack.c.l.b16 %v323
        %v615 = vunpack.c.l.b16 %v324
        %v616 = vunpack.c.l.b16 %v325
        %v617 = vunpack.c.l.b16 %v326
        %v618 = vunpack.c.l.b16 %v327
        %v619 = vunpack.c.l.b16 %v328
        %v620 = vunpack.c.l.b16 %v329
        %v621 = vunpack.c.l.b16 %v330
        %v622 = vunpack.c.l.b16 %v331
        %v623 = vunpack.c.l.b16 %v332
        %v624 = vunpack.c.l.b16 %v333
        %v625 = vunpack.c.l.b16 %v334
        %v626 = vpack.c.b16 %v499, %v498
        %v627 = vpack.c.b16 %v501, %v500
        %v628 = vpack.c.b16 %v503, %v502
        %v629 = vpack.c.b16 %v505, %v504
        %v630 = vpack.c.b16 %v507, %v506
        %v631 = vpack.c.b16 %v509, %v508
        %v632 = vpack.c.b16 %v511, %v510
        %v633 = vpack.c.b16 %v513, %v512
        %v634 = vpack.c.b16 %v515, %v514
        %v635 = vpack.c.b16 %v517, %v516
        %v636 = vpack.c.b16 %v519, %v518
        %v637 = vpack.c.b16 %v521, %v520
        %v638 = vpack.c.b16 %v523, %v522
        %v639 = vpack.c.b16 %v525, %v524
        %v640 = vpack.c.b16 %v527, %v526
        %v641 = vpack.c.b16 %v529, %v528
        %v642 = vpack.c.b16 %v531, %v530
        %v643 = vpack.c.b16 %v533, %v532
        %v644 = vpack.c.b16 %v535, %v534
        %v645 = vpack.c.b16 %v537, %v536
        %v646 = vpack.c.b16 %v539, %v538
        %v647 = vpack.c.b16 %v541, %v540
        %v648 = vpack.c.b16 %v543, %v542
        %v649 = vpack.c.b16 %v545, %v544
        %v650 = vpack.c.b16 %v547, %v546
        %v651 = vpack.c.b16 %v549, %v548
        %v652 = vpack.c.b16 %v551, %v550
        %v653 = vpack.c.b16 %v553, %v552
        %v654 = vpack.c.b16 %v555, %v554
        %v655 = vpack.c.b16 %v557, %v556
        %v656 = vpack.c.b16 %v559, %v558
        %v657 = vpack.c.b16 %v561, %v560
        %v658 = vpack.c.b16 %v563, %v562
        %v659 = vpack.c.b16 %v565, %v564
        %v660 = vpack.c.b16 %v567, %v566
        %v661 = vpack.c.b16 %v569, %v568
        %v662 = vpack.c.b16 %v571, %v570
        %v663 = vpack.c.b16 %v573, %v572
        %v664 = vpack.c.b16 %v575, %v574
        %v665 = vpack.c.b16 %v577, %v576
        %v666 = vpack.c.b16 %v579, %v578
        %v667 = vpack.c.b16 %v581, %v580
        %v668 = vpack.c.b16 %v583, %v582
        %v669 = vpack.c.b16 %v585, %v584
        %v670 = vpack.c.b16 %v587, %v586
        %v671 = vpack.c.b16 %v589, %v588
        %v672 = vpack.c.b16 %v591, %v590
        %v673 = vpack.c.b16 %v593, %v592
        %v674 = vpack.c.b16 %v595, %v594
        %v675 = vpack.c.b16 %v597, %v596
        %v676 = vpack.c.b16 %v599, %v598
        %v677 = vpack.c.b16 %v601, %v600
        %v678 = vpack.c.b16 %v603, %v602
        %v679 = vpack.c.b16 %v605, %v604
        %v680 = vpack.c.b16 %v607, %v606
        %v681 = vpack.c.b16 %v609, %v608
        %v682 = vpack.c.b16 %v611, %v610
        %v683 = vpack.c.b16 %v613, %v612
        %v684 = vpack.c.b16 %v615, %v614
        %v685 = vpack.c.b16 %v617, %v616
        %v686 = vpack.c.b16 %v619, %v618
        %v687 = vpack.c.b16 %v621, %v620
        %v688 = vpack.c.b16 %v623, %v622
        %v689 = vpack.c.b16 %v625, %v624
        %754 = vmatprep.subr.bf16.mxu0 0
        %755 = vmatpush1.bf16.msra.mxu0 %v633
        %756 = vmatprep.subr.bf16.mxu0 0
        %757 = vmatpush1.bf16.msra.mxu0 %v632
        %758 = vmatprep.subr.bf16.mxu0 0
        %759 = vmatpush1.bf16.msra.mxu0 %v631
        %760 = vmatprep.subr.bf16.mxu0 0
        %761 = vmatpush1.bf16.msra.mxu0 %v630
        %762 = vmatprep.subr.bf16.mxu0 0
        %763 = vmatpush1.bf16.msra.mxu0 %v629
        %764 = vmatprep.subr.bf16.mxu0 0
        %765 = vmatpush1.bf16.msra.mxu0 %v628
        %766 = vmatprep.subr.bf16.mxu0 0
        %767 = vmatpush1.bf16.msra.mxu0 %v627
        %768 = vmatprep.subr.bf16.mxu0 0
        %769 = vmatpush1.bf16.msra.mxu0 %v626
        %770 = vmatprep.subr.bf16.mxu0 0
        %771 = vmatpush2.bf16.msra.mxu0 %v641
        %772 = vmatprep.subr.bf16.mxu0 0
        %773 = vmatpush2.bf16.msra.mxu0 %v640
        %774 = vmatprep.subr.bf16.mxu0 0
        %775 = vmatpush2.bf16.msra.mxu0 %v639
        %776 = vmatprep.subr.bf16.mxu0 0
        %777 = vmatpush2.bf16.msra.mxu0 %v638
        %778 = vmatprep.subr.bf16.mxu0 0
        %779 = vmatpush2.bf16.msra.mxu0 %v637
        %780 = vmatprep.subr.bf16.mxu0 0
        %781 = vmatpush2.bf16.msra.mxu0 %v636
        %782 = vmatprep.subr.bf16.mxu0 0
        %783 = vmatpush2.bf16.msra.mxu0 %v635
        %784 = vmatprep.subr.bf16.mxu0 0
        %785 = vmatpush2.bf16.msra.mxu0 %v634
        %786 = vmatprep.mubr.bf16.mxu0 %v355
        %787 = vmatmul.mubr.bf16.gmra.mxu0 %v354
        %v788 = vpop.f32.mrf.mxu0
        %v789 = vadd.f32 %v340, %v788
        %v790 = vpop.f32.mrf.mxu0
        %v791 = vpop.f32.mrf.mxu0
        %v792 = vpop.f32.mrf.mxu0
        %793 = vdwg.mxu0
        %794 = vmatprep.subr.bf16.mxu0 0
        %795 = vmatpush1.bf16.msra.mxu0 %v649
        %796 = vmatprep.subr.bf16.mxu0 0
        %797 = vmatpush1.bf16.msra.mxu0 %v648
        %798 = vmatprep.subr.bf16.mxu0 0
        %799 = vmatpush1.bf16.msra.mxu0 %v647
        %800 = vmatprep.subr.bf16.mxu0 0
        %801 = vmatpush1.bf16.msra.mxu0 %v646
        %802 = vmatprep.subr.bf16.mxu0 0
        %803 = vmatpush1.bf16.msra.mxu0 %v645
        %804 = vmatprep.subr.bf16.mxu0 0
        %805 = vmatpush1.bf16.msra.mxu0 %v644
        %806 = vmatprep.subr.bf16.mxu0 0
        %807 = vmatpush1.bf16.msra.mxu0 %v643
        %808 = vmatprep.subr.bf16.mxu0 0
        %809 = vmatpush1.bf16.msra.mxu0 %v642
        %810 = vmatprep.subr.bf16.mxu0 0
        %811 = vmatpush2.bf16.msra.mxu0 %v657
        %812 = vmatprep.subr.bf16.mxu0 0
        %813 = vmatpush2.bf16.msra.mxu0 %v656
        %814 = vmatprep.subr.bf16.mxu0 0
        %815 = vmatpush2.bf16.msra.mxu0 %v655
        %816 = vmatprep.subr.bf16.mxu0 0
        %817 = vmatpush2.bf16.msra.mxu0 %v654
        %818 = vmatprep.subr.bf16.mxu0 0
        %819 = vmatpush2.bf16.msra.mxu0 %v653
        %820 = vmatprep.subr.bf16.mxu0 0
        %821 = vmatpush2.bf16.msra.mxu0 %v652
        %822 = vmatprep.subr.bf16.mxu0 0
        %823 = vmatpush2.bf16.msra.mxu0 %v651
        %824 = vmatprep.subr.bf16.mxu0 0
        %825 = vmatpush2.bf16.msra.mxu0 %v650
        %826 = vmatprep.mubr.bf16.mxu0 %v357
        %827 = vmatmul.mubr.bf16.gmra.mxu0 %v356
        %v828 = vpop.f32.mrf.mxu0
        %v829 = vadd.f32 %v789, %v828
        %v830 = vpop.f32.mrf.mxu0
        %v831 = vpop.f32.mrf.mxu0
        %v832 = vpop.f32.mrf.mxu0
        %833 = vdwg.mxu0
        %834 = vmatprep.subr.bf16.mxu0 0
        %835 = vmatpush1.bf16.msra.mxu0 %v665
        %836 = vmatprep.subr.bf16.mxu0 0
        %837 = vmatpush1.bf16.msra.mxu0 %v664
        %838 = vmatprep.subr.bf16.mxu0 0
        %839 = vmatpush1.bf16.msra.mxu0 %v663
        %840 = vmatprep.subr.bf16.mxu0 0
        %841 = vmatpush1.bf16.msra.mxu0 %v662
        %842 = vmatprep.subr.bf16.mxu0 0
        %843 = vmatpush1.bf16.msra.mxu0 %v661
        %844 = vmatprep.subr.bf16.mxu0 0
        %845 = vmatpush1.bf16.msra.mxu0 %v660
        %846 = vmatprep.subr.bf16.mxu0 0
        %847 = vmatpush1.bf16.msra.mxu0 %v659
        %848 = vmatprep.subr.bf16.mxu0 0
        %849 = vmatpush1.bf16.msra.mxu0 %v658
        %850 = vmatprep.subr.bf16.mxu0 0
        %851 = vmatpush2.bf16.msra.mxu0 %v673
        %852 = vmatprep.subr.bf16.mxu0 0
        %853 = vmatpush2.bf16.msra.mxu0 %v672
        %854 = vmatprep.subr.bf16.mxu0 0
        %855 = vmatpush2.bf16.msra.mxu0 %v671
        %856 = vmatprep.subr.bf16.mxu0 0
        %857 = vmatpush2.bf16.msra.mxu0 %v670
        %858 = vmatprep.subr.bf16.mxu0 0
        %859 = vmatpush2.bf16.msra.mxu0 %v669
        %860 = vmatprep.subr.bf16.mxu0 0
        %861 = vmatpush2.bf16.msra.mxu0 %v668
        %862 = vmatprep.subr.bf16.mxu0 0
        %863 = vmatpush2.bf16.msra.mxu0 %v667
        %864 = vmatprep.subr.bf16.mxu0 0
        %865 = vmatpush2.bf16.msra.mxu0 %v666
        %866 = vmatprep.mubr.bf16.mxu0 %v359
        %867 = vmatmul.mubr.bf16.gmra.mxu0 %v358
        %v868 = vpop.f32.mrf.mxu0
        %v869 = vadd.f32 %v829, %v868
        %v870 = vpop.f32.mrf.mxu0
        %v871 = vpop.f32.mrf.mxu0
        %v872 = vpop.f32.mrf.mxu0
        %873 = vdwg.mxu0
        %874 = vmatprep.subr.bf16.mxu0 0
        %875 = vmatpush1.bf16.msra.mxu0 %v681
        %876 = vmatprep.subr.bf16.mxu0 0
        %877 = vmatpush1.bf16.msra.mxu0 %v680
        %878 = vmatprep.subr.bf16.mxu0 0
        %879 = vmatpush1.bf16.msra.mxu0 %v679
        %880 = vmatprep.subr.bf16.mxu0 0
        %881 = vmatpush1.bf16.msra.mxu0 %v678
        %882 = vmatprep.subr.bf16.mxu0 0
        %883 = vmatpush1.bf16.msra.mxu0 %v677
        %884 = vmatprep.subr.bf16.mxu0 0
        %885 = vmatpush1.bf16.msra.mxu0 %v676
        %886 = vmatprep.subr.bf16.mxu0 0
        %887 = vmatpush1.bf16.msra.mxu0 %v675
        %888 = vmatprep.subr.bf16.mxu0 0
        %889 = vmatpush1.bf16.msra.mxu0 %v674
        %890 = vmatprep.subr.bf16.mxu0 0
        %891 = vmatpush2.bf16.msra.mxu0 %v689
        %892 = vmatprep.subr.bf16.mxu0 0
        %893 = vmatpush2.bf16.msra.mxu0 %v688
        %894 = vmatprep.subr.bf16.mxu0 0
        %895 = vmatpush2.bf16.msra.mxu0 %v687
        %896 = vmatprep.subr.bf16.mxu0 0
        %897 = vmatpush2.bf16.msra.mxu0 %v686
        %898 = vmatprep.subr.bf16.mxu0 0
        %899 = vmatpush2.bf16.msra.mxu0 %v685
        %900 = vmatprep.subr.bf16.mxu0 0
        %901 = vmatpush2.bf16.msra.mxu0 %v684
        %902 = vmatprep.subr.bf16.mxu0 0
        %903 = vmatpush2.bf16.msra.mxu0 %v683
        %904 = vmatprep.subr.bf16.mxu0 0
        %905 = vmatpush2.bf16.msra.mxu0 %v682
        %906 = vmatprep.mubr.bf16.mxu0 %v361
        %907 = vmatmul.mubr.bf16.gmra.mxu0 %v360
        %v908 = vpop.f32.mrf.mxu0
        %v909 = vadd.f32 %v869, %v908
        %v910 = vpop.f32.mrf.mxu0
        %v911 = vpop.f32.mrf.mxu0
        %v912 = vpop.f32.mrf.mxu0
        %913 = vdwg.mxu0
        %914 = vst [vmem:[%s201] sm:$0xff] %v909
        %s915 = sand.u32 %s97, 1
        %s916 = scalar_lea.sflag [#allocation4], %s915
        %s917 = sand.u32 %s97, 1
        %s918 = smul.addr %s917, 8
        %s919 = scalar_lea.vmem [#allocation7], %s918
        // Predicated region
        $region41: #{tpu_custom_call.1} parent=31 // pred_check
          %p920 = pneg %p107
        $region42: #{tpu_custom_call.1} parent=31 // pred_check_branch
          %922 = sbr.rel (%p920) target = $region44
        $region43: #{tpu_custom_call.1} parent=31 // pred_region
          %s924 = ssub.s32 128, 128
          %925 = vsyncadd %s916, %s924
          %s926 = smul.addr %s21, 128
          %s927 = scalar_lea.hbm %s3, %s926
          %s929 = sshll.u32 %s919, 4
          %s930 = int_to_ptr.vmem [resolvable:$true] %s929
          %932 = dma.vmem_to_hbm [thread:$0]  %s930, 128, %s927, %s916
        $region44: #{tpu_custom_call.1} parent=31 // pred_fallthru
          _
      $region32: #{tpu_custom_call.1} parent=5 // pred_fallthru
        _
      %p933 = scmp.le.s32.totalorder 2, %s16
      // Predicated region
      $region45: #{tpu_custom_call.1} parent=5 // pred_check
        %p934 = pneg %p933
      $region46: #{tpu_custom_call.1} parent=5 // pred_check_branch
        %936 = sbr.rel (%p934) target = $region48
      $region47: #{tpu_custom_call.1} parent=5 // pred_region
        %s937 = ssub.s32 %s16, 2
        // Predicated region
        $region49: #{tpu_custom_call.1} parent=47 // pred_check
          %p938 = pneg %p113
        $region50: #{tpu_custom_call.1} parent=47 // pred_check_branch
          %940 = sbr.rel (%p938) target = $region52
        $region51: #{tpu_custom_call.1} parent=47 // pred_region
          %s941 = sand.u32 %s98, 1
          %s942 = scalar_lea.sflag [#allocation4], %s941
          %s943 = sand.u32 %s98, 1
          %s944 = smul.addr %s943, 8
          %s945 = scalar_lea.vmem [#allocation7], %s944
          %946 = dma.done %s942, 128
        $region52: #{tpu_custom_call.1} parent=47 // pred_fallthru
          _
      $region48: #{tpu_custom_call.1} parent=5 // pred_fallthru
        _
    $region6: #{tpu_custom_call.1} parent=1 // loop_footer
      %s20 = sadd.s32 1, %s16
    $region7: #{tpu_custom_call.1} parent=1 // loop_footer_branch
      %15 = sbr.rel target = $region3
    $region8: #{tpu_custom_call.1} parent=1 // loop_exit
      _
    %947 = vsyncpa [#allocation3], 1
    %s948 = scalar_lea.sflag [#allocation3], 1
    %949 = vsyncpa %s948, 1
    %950 = vsyncpa [#allocation6], 1
    %951 = vsyncpa [#allocation4], 1
    %s952 = scalar_lea.sflag [#allocation4], 1
    %953 = vsyncpa %s952, 1

</llo_original>
